<compile_context>
chip_gen: v7x
topology: tpu7x:2x2x1
jax: 0.10.0
libtpu: 0.0.40
codegen_flags: <defaults>
</compile_context>

<pallas_src>
import functools

import jax
import jax.numpy as jnp
from jax.experimental import pallas as pl
from jax.experimental.pallas import tpu as pltpu

BOARD_SIZE = 15                      # gomoku board
FEATURES = BOARD_SIZE * BOARD_SIZE   # 225
BN_EPS = 1e-5
SUBLANES = 8
VMEM_LIMIT_BYTES = 32 * 1024 * 1024  # safe on v5e/v6e/v7x


def _cdiv(a, b):
    return -(-a // b)


def _round_up(x, m):
    return (x + m - 1) // m * m


def _fold(total, total2, inv_n, g, b, w, fcb):
    """Fold BN(training) + Linear:  y @ w + fcb == x . s + offset.

    total/total2: (1, F) batch sum and sum-of-squares.
    Returns s (1, F) and offset (1, 1).
    """
    mean = total * inv_n                                     # (1, F)
    var = jnp.maximum(total2 * inv_n - mean * mean, 0.0)     # biased, clamped
    inv_std = jax.lax.rsqrt(var + BN_EPS)
    s = inv_std * g * w                                      # (1, F)
    offset = (fcb + jnp.sum(b * w, keepdims=True)
              - jnp.sum(mean * s, keepdims=True))            # (1, 1)
    return s, offset


# --------------------------- fused single-call path -------------------------

def _fused_kernel(x_ref, g_ref, b_ref, w_ref, fcb_ref, out_ref, *, inv_n):
    # x_ref: (B, F) resident in VMEM; read exactly once from HBM.
    x = x_ref[...]
    total = jnp.sum(x, axis=0, keepdims=True)                # (1, F)
    total2 = jnp.sum(x * x, axis=0, keepdims=True)           # (1, F)
    s, offset = _fold(total, total2, inv_n,
                      g_ref[...], b_ref[...], w_ref[...], fcb_ref[0, 0])
    # VPU multiply + lane reduce (skips a degenerate N=1 f32 MXU matvec).
    logits = jnp.sum(x * s, axis=-1, keepdims=True) + offset  # (B, 1)
    out_ref[...] = jnp.tanh(logits)


# ------------------------------ two-pass path --------------------------------

def _stats_kernel(x_ref, part_ref, *, valid_rows, block_rows):
    # x_ref:    (Bt, F) batch tile (last tile may overhang -> masked below)
    # part_ref: (1, 2, F) merged per-tile [sum; sum_sq]
    i = pl.program_id(0)
    x = x_ref[...]
    if valid_rows % block_rows != 0:   # trace-time: mask only if a tail exists
        rows = jax.lax.broadcasted_iota(jnp.int32, (block_rows, 1), 0)
        x = jnp.where(rows + i * block_rows < valid_rows, x, 0.0)
    part_ref[0, 0:1, :] = jnp.sum(x, axis=0, keepdims=True)
    part_ref[0, 1:2, :] = jnp.sum(x * x, axis=0, keepdims=True)


def _apply_kernel(x_ref, part_ref, g_ref, b_ref, w_ref, fcb_ref, out_ref, *,
                  inv_n):
    # part_ref: (P, 2, F) partials, resident (constant index_map); the fold is
    # recomputed per tile (a couple of vregs of math, hidden under the DMA).
    summed = jnp.sum(part_ref[...], axis=0)                  # (2, F)
    s, offset = _fold(summed[0:1, :], summed[1:2, :], inv_n,
                      g_ref[...], b_ref[...], w_ref[...], fcb_ref[0, 0])
    x = x_ref[...]                                           # (Bt, F)
    logits = jnp.sum(x * s, axis=-1, keepdims=True) + offset  # (Bt, 1)
    out_ref[...] = jnp.tanh(logits)


# --------------------------------- wrapper -----------------------------------

def ensemble_output(x, gamma, beta, fc_w, fc_b, *,
                    block_b=4096, fused_max_rows=8192, max_resident_tiles=512):
    """EnsembleOutput.forward: returns (x, tanh(fc(bn(x.view(B, -1))))).

    Args:
      x:     (B, BOARD_SIZE, BOARD_SIZE) float32
      gamma: (F,)   BN weight
      beta:  (F,)   BN bias
      fc_w:  (1, F) Linear weight (PyTorch layout)
      fc_b:  (1,)   Linear bias
    Returns:
      (x, out) with out of shape (B,), values in (-1, 1).
    """
    B = x.shape[0]
    F = x.shape[1] * x.shape[2]
    x2d = x.reshape(B, F).astype(jnp.float32)     # row-major flatten (a view)

    g2d = gamma.reshape(1, F).astype(jnp.float32)
    b2d = beta.reshape(1, F).astype(jnp.float32)
    w2d = fc_w.reshape(1, F).astype(jnp.float32)
    fcb = fc_b.reshape(1, 1).astype(jnp.float32)
    inv_n = 1.0 / B

    vmem_spec = pl.BlockSpec(memory_space=pltpu.MemorySpace.VMEM)
    smem_spec = pl.BlockSpec(memory_space=pltpu.MemorySpace.SMEM)

    # ---- fused path: x resident in VMEM, read from HBM once ---------------
    if B <= fused_max_rows:
        out2d = pl.pallas_call(
            functools.partial(_fused_kernel, inv_n=inv_n),
            out_shape=jax.ShapeDtypeStruct((B, 1), jnp.float32),
            in_specs=[vmem_spec, vmem_spec, vmem_spec, vmem_spec, smem_spec],
            out_specs=vmem_spec,
            compiler_params=pltpu.CompilerParams(
                vmem_limit_bytes=VMEM_LIMIT_BYTES),
        )(x2d, g2d, b2d, w2d, fcb)
        return x, out2d[:, 0]

    # ---- two-pass path: balanced batch tiles, parallel grid ---------------
    nbt = _cdiv(B, block_b)
    if nbt > 1 and nbt % 2 == 1:
        nbt += 1                        # even tile count -> both TCs on v7x
    Bt = _round_up(_cdiv(B, nbt), SUBLANES)      # balanced tile height
    nbt = _cdiv(B, Bt)                  # guarantees no fully-empty tail tile

    # pass 1: merged (sum, sum_sq) partials per tile
    parts = pl.pallas_call(
        functools.partial(_stats_kernel, valid_rows=B, block_rows=Bt),
        out_shape=jax.ShapeDtypeStruct((nbt, 2, F), jnp.float32),
        grid=(nbt,),
        in_specs=[pl.BlockSpec((Bt, F), lambda i: (i, 0))],
        out_specs=pl.BlockSpec((1, 2, F), lambda i: (i, 0, 0)),
        compiler_params=pltpu.CompilerParams(
            dimension_semantics=("parallel",),
            vmem_limit_bytes=VMEM_LIMIT_BYTES),
    )(x2d)

    if nbt > max_resident_tiles:
        # keep the resident partials block tiny for extreme batch sizes
        parts = jnp.sum(parts, axis=0, keepdims=True)
    P = parts.shape[0]

    # pass 2: fold in-kernel + tanh(x . s + offset); tail rows never stored
    out2d = pl.pallas_call(
        functools.partial(_apply_kernel, inv_n=inv_n),
        out_shape=jax.ShapeDtypeStruct((B, 1), jnp.float32),
        grid=(nbt,),
        in_specs=[
            pl.BlockSpec((Bt, F), lambda i: (i, 0)),       # x tile
            pl.BlockSpec((P, 2, F), lambda i: (0, 0, 0)),  # partials (resident)
            pl.BlockSpec((1, F), lambda i: (0, 0)),        # gamma
            pl.BlockSpec((1, F), lambda i: (0, 0)),        # beta
            pl.BlockSpec((1, F), lambda i: (0, 0)),        # fc weight
            smem_spec,                                     # fc bias scalar
        ],
        out_specs=pl.BlockSpec((Bt, 1), lambda i: (i, 0)),
        compiler_params=pltpu.CompilerParams(
            dimension_semantics=("parallel",),
            vmem_limit_bytes=VMEM_LIMIT_BYTES),
    )(x2d, parts, g2d, b2d, w2d, fcb)

    return x, out2d[:, 0]


if __name__ == "__main__":
    key = jax.random.PRNGKey(0)
    k_x, k_g, k_b, k_w, k_fb, k_x2 = jax.random.split(key, 6)

    def reference(xin, gamma, beta, fc_w, fc_b):
        Bn = xin.shape[0]
        x2d = xin.reshape(Bn, -1)
        mean = x2d.mean(axis=0, keepdims=True)
        var = ((x2d - mean) ** 2).mean(axis=0, keepdims=True)
        y = (x2d - mean) / jnp.sqrt(var + BN_EPS) * gamma + beta
        return jnp.tanh(y @ fc_w.reshape(-1, 1) + fc_b).reshape(-1)

    # Deterministic synthetic parameters (no checkpoint loading).
    gamma = 1.0 + 0.1 * jax.random.normal(k_g, (FEATURES,), dtype=jnp.float32)
    beta = 0.1 * jax.random.normal(k_b, (FEATURES,), dtype=jnp.float32)
    bound = 1.0 / (FEATURES ** 0.5)
    fc_w = jax.random.uniform(k_w, (1, FEATURES), minval=-bound, maxval=bound,
                              dtype=jnp.float32)
    fc_b = jax.random.uniform(k_fb, (1,), minval=-bound, maxval=bound,
                              dtype=jnp.float32)

    # 1) Fused single-call path (default for small/medium B).
    B1 = 8
    x1 = jax.random.normal(k_x, (B1, BOARD_SIZE, BOARD_SIZE), dtype=jnp.float32)
    x_out1, v1 = ensemble_output(x1, gamma, beta, fc_w, fc_b)
    jax.block_until_ready((x_out1, v1))
    ref1 = reference(x1, gamma, beta, fc_w, fc_b)
    assert v1.shape == (B1,)
    assert jnp.allclose(v1, ref1, atol=1e-4, rtol=1e-4), float(
        jnp.max(jnp.abs(v1 - ref1)))
    assert jnp.array_equal(x_out1, x1)

    # 2) Two-pass tiled path, forced with a tiny tile to exercise tail masking
    #    (B not a multiple of the tile height).
    B2 = 37
    x2 = jax.random.normal(k_x2, (B2, BOARD_SIZE, BOARD_SIZE), dtype=jnp.float32)
    x_out2, v2 = ensemble_output(x2, gamma, beta, fc_w, fc_b,
                                 block_b=16, fused_max_rows=0)
    jax.block_until_ready((x_out2, v2))
    ref2 = reference(x2, gamma, beta, fc_w, fc_b)
    assert v2.shape == (B2,)
    assert jnp.allclose(v2, ref2, atol=1e-4, rtol=1e-4), float(
        jnp.max(jnp.abs(v2 - ref2)))
    assert jnp.array_equal(x_out2, x2)

    # TODO(synk): PyTorch training-mode running_mean/running_var buffer
    # updates are side effects not represented in the returned value; omitted.
    print("KERNEL_OK")
</pallas_src>

<mosaic_0001>
module attributes {stable_mosaic.version = 11 : i64} {
  func.func @_fused_kernel(%arg0: memref<8x225xf32, #tpu.memory_space<vmem>>, %arg1: memref<1x225xf32, #tpu.memory_space<vmem>>, %arg2: memref<1x225xf32, #tpu.memory_space<vmem>>, %arg3: memref<1x225xf32, #tpu.memory_space<vmem>>, %arg4: memref<1x1xf32, #tpu.memory_space<smem>>, %arg5: memref<8x1xf32, #tpu.memory_space<vmem>>) attributes {dimension_semantics = [], scalar_prefetch = 0 : i64, scratch_operands = 0 : i64, tpu.core_type = #tpu.core_type<tc>} {
    %c0 = arith.constant 0 : index
    %c0_0 = arith.constant 0 : index
    %0 = vector.load %arg0[%c0, %c0_0] : memref<8x225xf32, #tpu.memory_space<vmem>>, vector<8x225xf32>
    %cst = arith.constant dense<0.000000e+00> : vector<225xf32>
    %1 = vector.multi_reduction <add>, %0, %cst [0] : vector<8x225xf32> to vector<225xf32>
    %2 = vector.shape_cast %1 : vector<225xf32> to vector<1x225xf32>
    %3 = arith.mulf %0, %0 : vector<8x225xf32>
    %cst_1 = arith.constant dense<0.000000e+00> : vector<225xf32>
    %4 = vector.multi_reduction <add>, %3, %cst_1 [0] : vector<8x225xf32> to vector<225xf32>
    %5 = vector.shape_cast %4 : vector<225xf32> to vector<1x225xf32>
    %c0_2 = arith.constant 0 : index
    %c0_3 = arith.constant 0 : index
    %6 = vector.load %arg1[%c0_2, %c0_3] : memref<1x225xf32, #tpu.memory_space<vmem>>, vector<1x225xf32>
    %c0_4 = arith.constant 0 : index
    %c0_5 = arith.constant 0 : index
    %7 = vector.load %arg2[%c0_4, %c0_5] : memref<1x225xf32, #tpu.memory_space<vmem>>, vector<1x225xf32>
    %c0_6 = arith.constant 0 : index
    %c0_7 = arith.constant 0 : index
    %8 = vector.load %arg3[%c0_6, %c0_7] : memref<1x225xf32, #tpu.memory_space<vmem>>, vector<1x225xf32>
    %c0_8 = arith.constant 0 : index
    %c0_9 = arith.constant 0 : index
    %9 = memref.load %arg4[%c0_8, %c0_9] : memref<1x1xf32, #tpu.memory_space<smem>>
    %cst_10 = arith.constant 1.250000e-01 : f32
    %10 = vector.broadcast %cst_10 : f32 to vector<1x225xf32>
    %11 = arith.mulf %2, %10 : vector<1x225xf32>
    %cst_11 = arith.constant 1.250000e-01 : f32
    %12 = vector.broadcast %cst_11 : f32 to vector<1x225xf32>
    %13 = arith.mulf %5, %12 : vector<1x225xf32>
    %14 = arith.mulf %11, %11 : vector<1x225xf32>
    %15 = arith.subf %13, %14 : vector<1x225xf32>
    %cst_12 = arith.constant 0.000000e+00 : f32
    %16 = vector.broadcast %cst_12 : f32 to vector<1x225xf32>
    %17 = arith.maximumf %15, %16 : vector<1x225xf32>
    %cst_13 = arith.constant 9.99999974E-6 : f32
    %18 = vector.broadcast %cst_13 : f32 to vector<1x225xf32>
    %19 = arith.addf %17, %18 : vector<1x225xf32>
    %20 = math.rsqrt %19 : vector<1x225xf32>
    %21 = arith.mulf %20, %6 : vector<1x225xf32>
    %22 = arith.mulf %21, %8 : vector<1x225xf32>
    %23 = arith.mulf %7, %8 : vector<1x225xf32>
    %24 = vector.shape_cast %23 : vector<1x225xf32> to vector<1x1x225xf32>
    %cst_14 = arith.constant dense<0.000000e+00> : vector<1xf32>
    %25 = vector.multi_reduction <add>, %24, %cst_14 [1, 2] : vector<1x1x225xf32> to vector<1xf32>
    %26 = vector.shape_cast %25 : vector<1xf32> to vector<1x1x1xf32>
    %27 = vector.extract %26[0, 0, 0] : f32 from vector<1x1x1xf32>
    %28 = vector.broadcast %27 : f32 to vector<1x1xf32>
    %29 = vector.broadcast %9 : f32 to vector<1x1xf32>
    %30 = arith.addf %29, %28 : vector<1x1xf32>
    %31 = arith.mulf %11, %22 : vector<1x225xf32>
    %32 = vector.shape_cast %31 : vector<1x225xf32> to vector<1x1x225xf32>
    %cst_15 = arith.constant dense<0.000000e+00> : vector<1xf32>
    %33 = vector.multi_reduction <add>, %32, %cst_15 [1, 2] : vector<1x1x225xf32> to vector<1xf32>
    %34 = vector.shape_cast %33 : vector<1xf32> to vector<1x1x1xf32>
    %35 = vector.extract %34[0, 0, 0] : f32 from vector<1x1x1xf32>
    %36 = vector.broadcast %35 : f32 to vector<1x1xf32>
    %37 = arith.subf %30, %36 : vector<1x1xf32>
    %38 = vector.broadcast %22 : vector<1x225xf32> to vector<8x225xf32>
    %39 = arith.mulf %0, %38 : vector<8x225xf32>
    %cst_16 = arith.constant dense<0.000000e+00> : vector<8xf32>
    %40 = vector.multi_reduction <add>, %39, %cst_16 [1] : vector<8x225xf32> to vector<8xf32>
    %41 = vector.shape_cast %40 : vector<8xf32> to vector<8x1xf32>
    %42 = vector.broadcast %37 : vector<1x1xf32> to vector<8x1xf32>
    %43 = arith.addf %41, %42 : vector<8x1xf32>
    %44 = math.tanh %43 : vector<8x1xf32>
    %c0_17 = arith.constant 0 : index
    %c0_18 = arith.constant 0 : index
    %45 = vector.load %arg5[%c0_17, %c0_18] : memref<8x1xf32, #tpu.memory_space<vmem>>, vector<8x1xf32>
    tpu.vector_store %arg5[%c0_17, %c0_18], %44 {strides = array<i32>} : memref<8x1xf32, #tpu.memory_space<vmem>>, vector<8x1xf32>,
    return
  }
}

</mosaic_0001>

<llo_original>
// kernel: tpu_custom_call.1
$region0: #{tpu_custom_call.1}
  #allocation0 [shape = 'u32[]', space=smem, size = 0x4, offset = 0x4, fixed_abs, tag = 'smem constant byte address 0x4 - core index']
  #allocation1 [shape = 'u32[144,128]{1,0:T(1,128)}', space=vmem, size = 0x12000, scoped, tag = 'internal scratch']
  #allocation2 [shape = 'f32[1,1]{1,0:T(1,128)S(6)}', space=smem, size = 0x200, scoped, tag = 'scoped memory for tpu_custom_call.1']
  %s0 = inlined_call_operand.hbm [shape: f32[8,225], index: 0, kind: input, shape index: {}]
  %s1 = inlined_call_operand.vmem [shape: f32[1,225], index: 1, kind: input, shape index: {}]
  %s2 = inlined_call_operand.vmem [shape: f32[1,225], index: 2, kind: input, shape index: {}]
  %s3 = inlined_call_operand.vmem [shape: f32[1,225], index: 3, kind: input, shape index: {}]
  %s4 = inlined_call_operand.<no memory space> [shape: f32[1,1], index: 4, kind: input, shape index: {}]
  %s5 = inlined_call_operand.vmem [shape: f32[8,1], index: 5, kind: output, shape index: {}]
  %s6 = sld [smem:[#allocation0]]
  $region34: #{tpu_custom_call.1} parent=0
    _
  %s8 = ssub.s32 1, %s6
  %s9 = scalar_select 0, %s8, %s6
  %10 = sst [smem:[#allocation2]] %s4
  $region1: #{tpu_custom_call.1} parent=0
    #allocation3 [shape = 'u8[8192]{0}', space=vmem, size = 0x2000, scoped, tag = 'input window, operand 0, single buffered']
    #allocation4 [shape = 's32[1]{0}', space=sflag, size = 0x4, scoped, tag = 'scoped memory for tpu_custom_call.1']
    %11 = vsyncpa [#allocation4], 0
    // Predicated region
    $region2: #{tpu_custom_call.1} parent=1 // pred_check
      _
    $region3: #{tpu_custom_call.1} parent=1 // pred_check_branch
      %13 = sbr.rel (0) target = $region5
    $region4: #{tpu_custom_call.1} parent=1 // pred_region
      %s15 = ssub.s32 256, 256
      %16 = vsyncadd [#allocation4], %s15
      %s18 = sshll.u32 [#allocation3], 4
      %s19 = int_to_ptr.vmem [resolvable:$true] %s18
      %21 = dma.hbm_to_vmem [thread:$0]  %s0, 256, %s19, [#allocation4]
    $region5: #{tpu_custom_call.1} parent=1 // pred_fallthru
      _
    // Predicated region
    $region6: #{tpu_custom_call.1} parent=1 // pred_check
      _
    $region7: #{tpu_custom_call.1} parent=1 // pred_check_branch
      %23 = sbr.rel (0) target = $region9
    $region8: #{tpu_custom_call.1} parent=1 // pred_region
      _
    $region9: #{tpu_custom_call.1} parent=1 // pred_fallthru
      _
    // Predicated region
    $region10: #{tpu_custom_call.1} parent=1 // pred_check
      _
    $region11: #{tpu_custom_call.1} parent=1 // pred_check_branch
      %25 = sbr.rel (0) target = $region13
    $region12: #{tpu_custom_call.1} parent=1 // pred_region
      _
    $region13: #{tpu_custom_call.1} parent=1 // pred_fallthru
      _
    // Predicated region
    $region14: #{tpu_custom_call.1} parent=1 // pred_check
      _
    $region15: #{tpu_custom_call.1} parent=1 // pred_check_branch
      %27 = sbr.rel (0) target = $region17
    $region16: #{tpu_custom_call.1} parent=1 // pred_region
      _
    $region17: #{tpu_custom_call.1} parent=1 // pred_fallthru
      _
    // Predicated region
    $region18: #{tpu_custom_call.1} parent=1 // pred_check
      _
    $region19: #{tpu_custom_call.1} parent=1 // pred_check_branch
      %29 = sbr.rel (0) target = $region21
    $region20: #{tpu_custom_call.1} parent=1 // pred_region
      _
    $region21: #{tpu_custom_call.1} parent=1 // pred_fallthru
      _
    // Predicated region
    $region22: #{tpu_custom_call.1} parent=1 // pred_check
      _
    $region23: #{tpu_custom_call.1} parent=1 // pred_check_branch
      %31 = sbr.rel (0) target = $region25
    $region24: #{tpu_custom_call.1} parent=1 // pred_region
      %32 = dma.done [#allocation4], 256
    $region25: #{tpu_custom_call.1} parent=1 // pred_fallthru
      _
    %v33 = vld [vmem:[#allocation3] sm:$0xff]
    %v34 = vld [vmem:[#allocation3 + $0x8] sm:$0xff]
    %v35 = vrot.slane %v33, 4
    %v36 = vadd.f32 %v33, %v35
    %v37 = vrot.slane %v36, 2
    %v38 = vadd.f32 %v36, %v37
    %v39 = vrot.slane %v38, 1
    %v40 = vadd.f32 %v38, %v39
    %vm41 = vcmask 793600
    %v42 = vsel %vm41, %v34, 0.0
    %v43 = vrot.slane %v42, 4
    %v44 = vadd.f32 %v42, %v43
    %v45 = vrot.slane %v44, 2
    %v46 = vadd.f32 %v44, %v45
    %v47 = vrot.slane %v46, 1
    %v48 = vadd.f32 %v46, %v47
    %v49 = vmul.f32 %v33, %v33
    %v50 = vmul.f32 %v34, %v34
    %v51 = vrot.slane %v49, 4
    %v52 = vadd.f32 %v49, %v51
    %v53 = vrot.slane %v52, 2
    %v54 = vadd.f32 %v52, %v53
    %v55 = vrot.slane %v54, 1
    %v56 = vadd.f32 %v54, %v55
    %v57 = vsel %vm41, %v50, 0.0
    %v58 = vrot.slane %v57, 4
    %v59 = vadd.f32 %v57, %v58
    %v60 = vrot.slane %v59, 2
    %v61 = vadd.f32 %v59, %v60
    %v62 = vrot.slane %v61, 1
    %v63 = vadd.f32 %v61, %v62
    %v64 = vld [vmem:[%s1] sm:$0x3]
    %v65 = vld [vmem:[%s2] sm:$0x3]
    %v66 = vld [vmem:[%s3] sm:$0x3]
    %s67 = sld [smem:[#allocation2]]
    %v68 = vmul.f32 %v40, 0.125
    %v69 = vmul.f32 %v48, 0.125
    %v70 = vmul.f32 %v56, 0.125
    %v71 = vmul.f32 %v63, 0.125
    %v72 = vmul.f32 %v68, %v68
    %v73 = vmul.f32 %v69, %v69
    %v74 = vsub.f32 %v70, %v72
    %v75 = vsub.f32 %v71, %v73
    %v76 = vmax.f32 %v74, 0.0
    %v77 = vmax.f32 %v75, 0.0
    %v78 = vadd.f32 %v76, 1e-05
    %v79 = vadd.f32 %v77, 1e-05
    %v80 = vrsqrt.pop %v78
    %v81 = vrsqrt.pop %v79
    %v83 = vlaneseq
    %v84 = vshrl.u32 %v83, 7
    %v85 = vsub.s32 0, %v84
    %v86 = vrot.slane %v64, %v85
    %v87 = vlaneseq
    %v88 = vshrl.u32 %v87, 7
    %v89 = vsub.s32 1, %v88
    %v90 = vrot.slane %v64, %v89
    %v93 = vmul.f32 %v80, %v86
    %v94 = vmul.f32 %v81, %v90
    %v96 = vlaneseq
    %v97 = vshrl.u32 %v96, 7
    %v98 = vsub.s32 0, %v97
    %v99 = vrot.slane %v66, %v98
    %v100 = vlaneseq
    %v101 = vshrl.u32 %v100, 7
    %v102 = vsub.s32 1, %v101
    %v103 = vrot.slane %v66, %v102
    %v106 = vmul.f32 %v93, %v99
    %v107 = vmul.f32 %v94, %v103
    %v108 = vmul.f32 %v65, %v66
    %v110 = vlaneseq
    %v111 = vshrl.u32 %v110, 7
    %v112 = vsub.s32 0, %v111
    %v113 = vrot.slane %v108, %v112
    %v114 = vlaneseq
    %v115 = vshrl.u32 %v114, 7
    %v116 = vsub.s32 1, %v115
    %v117 = vrot.slane %v108, %v116
    %vm120 = vcmask 1040384
    %v121 = vsel %vm120, %v113, 0.0
    %vm122 = vcmask 786432
    %v123 = vsel %vm122, %v117, 0.0
    %v124 = vadd.f32 %v121, %v123
    %125 = vadd.xlane.f32.xlu0 %v124
    %v126 = vpop.xlane.xlu0 %125
    %v127 = vrot.slane %v126, 4
    %v128 = vadd.f32 %v126, %v127
    %v129 = vrot.slane %v128, 2
    %v130 = vadd.f32 %v128, %v129
    %v131 = vrot.slane %v130, 1
    %v132 = vadd.f32 %v130, %v131
    %s133 = vtos %v132
    %v134 = vstv %s133
    %v135 = vstv %s67
    %v136 = vadd.f32 %v135, %v134
    %v137 = vmul.f32 %v68, %v106
    %v138 = vmul.f32 %v69, %v107
    %v139 = vsel %vm120, %v137, 0.0
    %v140 = vsel %vm122, %v138, 0.0
    %v141 = vadd.f32 %v139, %v140
    %142 = vadd.xlane.f32.xlu0 %v141
    %v143 = vpop.xlane.xlu0 %142
    %v144 = vrot.slane %v143, 4
    %v145 = vadd.f32 %v143, %v144
    %v146 = vrot.slane %v145, 2
    %v147 = vadd.f32 %v145, %v146
    %v148 = vrot.slane %v147, 1
    %v149 = vadd.f32 %v147, %v148
    %s150 = vtos %v149
    %v151 = vstv %s150
    %v152 = vsub.f32 %v136, %v151
    %v153 = vlaneseq
    %v154 = vshrl.u32 %v153, 7
    %v155 = vsub.s32 0, %v154
    %v156 = vrot.slane %v106, %v155
    %v157 = vlaneseq
    %v158 = vshrl.u32 %v157, 7
    %v159 = vsub.s32 0, %v158
    %v160 = vrot.slane %v107, %v159
    %v161 = vmul.f32 %v33, %v156
    %v162 = vmul.f32 %v34, %v160
    %v163 = vsel %vm41, %v162, 0.0
    %v164 = vadd.f32 %v161, %v163
    %165 = vadd.xlane.f32.xlu0 %v164
    %v166 = vpop.xlane.xlu0 %165
    %v167 = vadd.f32 %v166, %v152
    %v168 = vtanh.pop %v167
    %vm169 = vcmask 7168
    %170 = vst.msk [vmem:[%s5] sm:$0xff] %vm169, %v168
    // Predicated region
    $region26: #{tpu_custom_call.1} parent=1 // pred_check
      _
    $region27: #{tpu_custom_call.1} parent=1 // pred_check_branch
      %172 = sbr.rel (0) target = $region29
    $region28: #{tpu_custom_call.1} parent=1 // pred_region
      _
    $region29: #{tpu_custom_call.1} parent=1 // pred_fallthru
      _
    // Predicated region
    $region30: #{tpu_custom_call.1} parent=1 // pred_check
      _
    $region31: #{tpu_custom_call.1} parent=1 // pred_check_branch
      %174 = sbr.rel (0) target = $region33
    $region32: #{tpu_custom_call.1} parent=1 // pred_region
      _
    $region33: #{tpu_custom_call.1} parent=1 // pred_fallthru
      _
    %175 = vsyncpa [#allocation4], 1

</llo_original>
